<compile_context>
chip_gen: v5e
topology: v5e:2x2
jax: 0.10.0
libtpu: 0.0.40
codegen_flags: <defaults>
</compile_context>

<pallas_src>
import functools

import jax
import jax.numpy as jnp
from jax import lax
from jax.experimental import pallas as pl
from jax.experimental.pallas import tpu as pltpu


# ----------------------------------------------------------------------------
# Kernel helpers / kernels
# ----------------------------------------------------------------------------
def _project_and_attend(f, m, wq_ref, bq_ref, wk_ref, bk_ref):
    """Collapsed q/k projections + batched (pre-scaled) attention + attn@V."""
    bblk, n, h = f.shape
    mm = m.shape[1]
    # Collapse (Bblk, rows) into sublanes so each projection is one MXU dot.
    # Layout-free when N / M are multiples of 8 (Mosaic inserts a copy otherwise).
    q = jnp.dot(f.reshape(bblk * n, h), wq_ref[...],
                preferred_element_type=jnp.float32) + bq_ref[...]
    k = jnp.dot(m.reshape(bblk * mm, h), wk_ref[...],
                preferred_element_type=jnp.float32) + bk_ref[...]
    q = q.reshape(bblk, n, h)
    k = k.reshape(bblk, mm, h)
    # 1/(sqrt(H)*tau) already folded into wq / bq host-side.
    attn = jnp.einsum('bnh,bmh->bnm', q, k,
                      preferred_element_type=jnp.float32)          # [Bblk, N, M]
    aug = jnp.einsum('bnm,bmh->bnh', attn, m,
                     preferred_element_type=jnp.float32)           # [Bblk, N, H]
    return attn, aug


def _fan_feat_kernel(f_ref, m_ref, wq_ref, bq_ref, wk_ref, bk_ref, feat_ref):
    """No-labels path: emit lane-dense [Bblk, N, 2H] = [features | aug]."""
    f = f_ref[...]
    m = m_ref[...]
    _, aug = _project_and_attend(f, m, wq_ref, bq_ref, wk_ref, bk_ref)
    feat_ref[...] = jnp.concatenate([f, aug], axis=-1)


def _fan_feat_lab_kernel(f_ref, m_ref, lab_ref, mlab_ref,
                         wq_ref, bq_ref, wk_ref, bk_ref,
                         feat_ref, labout_ref):
    """Labels path: feature output plus 0.5*(attn@onehot_mem) + 0.5*onehot(labels)."""
    f = f_ref[...]
    m = m_ref[...]
    attn, aug = _project_and_attend(f, m, wq_ref, bq_ref, wk_ref, bk_ref)
    feat_ref[...] = jnp.concatenate([f, aug], axis=-1)

    bblk, n, _ = f.shape
    mm = m.shape[1]
    c = labout_ref.shape[-1]
    # In-kernel 0.5*one_hot from int labels (VPU compare/select; exact since
    # 0.5 is a power of two, so it matches 0.5*(attn@onehot) bit-for-bit).
    ohm = jnp.where(
        mlab_ref[...] == lax.broadcasted_iota(jnp.int32, (bblk, mm, c), 2),
        jnp.float32(0.5), jnp.float32(0.0))                        # [Bblk, M, C]
    ohl = jnp.where(
        lab_ref[...] == lax.broadcasted_iota(jnp.int32, (bblk, n, c), 2),
        jnp.float32(0.5), jnp.float32(0.0))                        # [Bblk, N, C]
    labout_ref[...] = jnp.einsum('bnm,bmc->bnc', attn, ohm,
                                 preferred_element_type=jnp.float32) + ohl


# ----------------------------------------------------------------------------
# Block sizing
# ----------------------------------------------------------------------------
def _pick_bblk(b, n, m, h, c, budget_bytes=12 * 1024 * 1024):
    """Largest divisor of B whose double-buffered per-step footprint fits VMEM.

    Budget is conservative (fits the 16 MiB default scoped VMEM on v5e and the
    64 MiB physical VMEM on v7x without touching vmem_limit_bytes)."""
    per_ep = 4 * (n * h + m * h + n * 2 * h + n * c + (n + m))
    per_ep *= 2  # double buffering
    cap = max(1, budget_bytes // per_ep)
    bblk = 1
    for d in range(1, b + 1):
        if b % d == 0 and d <= cap:
            bblk = d
    return bblk


# ----------------------------------------------------------------------------
# Wrapper
# ----------------------------------------------------------------------------
@functools.partial(jax.jit, static_argnames=("num_classes",))
def feature_augmentation_cat(params, features, memory_features,
                             labels=None, memory_labels=None, num_classes=7):
    """JAX/Pallas equivalent of FeatureAugmentationNetworkCat.forward.

    Accepts a single episode (features [N,H], memory [M,H], labels [N]) or a
    batch of independent episodes with a leading B axis.
    """
    squeeze = features.ndim == 2
    if squeeze:
        features = features[None]
        memory_features = memory_features[None]
        if labels is not None:
            labels = labels[None]
            memory_labels = memory_labels[None]

    features = features.astype(jnp.float32)
    memory_features = memory_features.astype(jnp.float32)

    b, n, h = features.shape
    m = memory_features.shape[1]

    # Fold 1/(sqrt(H)*tau) into the q projection (free: weight is rebuilt per
    # call anyway); pre-transpose so the kernel contracts on the sublane dim.
    inv_scale = 1.0 / (jnp.sqrt(jnp.float32(h)) * params["tau"].astype(jnp.float32))
    wq_s = params["wq"].astype(jnp.float32).T * inv_scale               # [H, H]
    bq_s = (params["bq"].astype(jnp.float32) * inv_scale)[None, :]      # [1, H]
    wk_t = params["wk"].astype(jnp.float32).T                           # [H, H]
    bk = params["bk"].astype(jnp.float32)[None, :]                      # [1, H]
    # TODO(synk): cast activations/weights to bf16 for the MXU dots on v6e/v7x
    # once this stops being overhead-bound (would relax the 1e-5 tolerance).

    bblk = _pick_bblk(b, n, m, h, num_classes)
    grid = (b // bblk,)
    cparams = pltpu.CompilerParams(dimension_semantics=("parallel",))

    feat_spec = pl.BlockSpec((bblk, n, h), lambda i: (i, 0, 0))
    mem_spec = pl.BlockSpec((bblk, m, h), lambda i: (i, 0, 0))
    w_spec = pl.BlockSpec((h, h), lambda i: (0, 0))
    bias_spec = pl.BlockSpec((1, h), lambda i: (0, 0))
    out_feat_spec = pl.BlockSpec((bblk, n, 2 * h), lambda i: (i, 0, 0))

    if labels is None:
        feat_out = pl.pallas_call(
            _fan_feat_kernel,
            out_shape=jax.ShapeDtypeStruct((b, n, 2 * h), jnp.float32),
            grid=grid,
            in_specs=[feat_spec, mem_spec, w_spec, bias_spec, w_spec, bias_spec],
            out_specs=out_feat_spec,
            compiler_params=cparams,
        )(features, memory_features, wq_s, bq_s, wk_t, bk)
        return feat_out[0] if squeeze else feat_out

    # Trailing size-1 lane dim keeps the label BlockSpecs legal for any Bblk.
    lab3 = labels.astype(jnp.int32)[..., None]                          # [B, N, 1]
    mlab3 = memory_labels.astype(jnp.int32)[..., None]                  # [B, M, 1]

    feat_out, lab_out = pl.pallas_call(
        _fan_feat_lab_kernel,
        out_shape=(jax.ShapeDtypeStruct((b, n, 2 * h), jnp.float32),
                   jax.ShapeDtypeStruct((b, n, num_classes), jnp.float32)),
        grid=grid,
        in_specs=[feat_spec, mem_spec,
                  pl.BlockSpec((bblk, n, 1), lambda i: (i, 0, 0)),
                  pl.BlockSpec((bblk, m, 1), lambda i: (i, 0, 0)),
                  w_spec, bias_spec, w_spec, bias_spec],
        out_specs=(out_feat_spec,
                   pl.BlockSpec((bblk, n, num_classes), lambda i: (i, 0, 0))),
        compiler_params=cparams,
    )(features, memory_features, lab3, mlab3, wq_s, bq_s, wk_t, bk)

    if squeeze:
        return feat_out[0], lab_out[0]
    return feat_out, lab_out


# ----------------------------------------------------------------------------
# Pure-JAX reference (for correctness check)
# ----------------------------------------------------------------------------
def _reference(params, features, memory_features, labels=None, memory_labels=None,
               num_classes=7):
    h = features.shape[-1]
    q = features @ params["wq"].T + params["bq"]
    k = memory_features @ params["wk"].T + params["bk"]
    attn = (q @ k.T) / (jnp.sqrt(jnp.float32(h)) * params["tau"])
    aug = attn @ memory_features
    feat_out = jnp.concatenate([features, aug], axis=-1)
    if labels is None:
        return feat_out
    oh_m = jax.nn.one_hot(memory_labels, num_classes, dtype=jnp.float32)
    oh_l = jax.nn.one_hot(labels, num_classes, dtype=jnp.float32)
    lab_out = 0.5 * (attn @ oh_m) + 0.5 * oh_l
    return feat_out, lab_out


# ----------------------------------------------------------------------------
# Main
# ----------------------------------------------------------------------------
if __name__ == "__main__":
    N, M, H, C, B = 8, 16, 32, 7, 4

    key = jax.random.PRNGKey(0)
    (k_wq, k_bq, k_wk, k_bk,
     k_feat, k_mem, k_lab, k_mlab) = jax.random.split(key, 8)

    params = {
        "wq": jax.random.normal(k_wq, (H, H), jnp.float32) * 0.05,
        "bq": jax.random.normal(k_bq, (H,), jnp.float32) * 0.05,
        "wk": jax.random.normal(k_wk, (H, H), jnp.float32) * 0.05,
        "bk": jax.random.normal(k_bk, (H,), jnp.float32) * 0.05,
        "tau": jnp.float32(1.0),
    }

    # B independent episodes.
    feats_b = jax.random.normal(k_feat, (B, N, H), jnp.float32)
    mems_b = jax.random.normal(k_mem, (B, M, H), jnp.float32)
    labs_b = jax.random.randint(k_lab, (B, N), 0, C, jnp.int32)
    mlabs_b = jax.random.randint(k_mlab, (B, M), 0, C, jnp.int32)

    # Single-instance, labels path.
    feat1, lab1 = feature_augmentation_cat(
        params, feats_b[0], mems_b[0], labs_b[0], mlabs_b[0], num_classes=C)
    jax.block_until_ready((feat1, lab1))

    # Single-instance, no-labels path.
    feat_only = feature_augmentation_cat(params, feats_b[0], mems_b[0])
    jax.block_until_ready(feat_only)

    # Batched paths: whole batch handled in a single gridded pallas_call.
    featB, labB = feature_augmentation_cat(
        params, feats_b, mems_b, labs_b, mlabs_b, num_classes=C)
    featB_only = feature_augmentation_cat(params, feats_b, mems_b)
    jax.block_until_ready((featB, labB, featB_only))

    # Verify against the pure-JAX reference.
    ref_feat1, ref_lab1 = _reference(params, feats_b[0], mems_b[0],
                                     labs_b[0], mlabs_b[0], C)
    ref_feat_only = _reference(params, feats_b[0], mems_b[0])
    ref_featB, ref_labB = jax.vmap(
        lambda f, mf, l, ml: _reference(params, f, mf, l, ml, C)
    )(feats_b, mems_b, labs_b, mlabs_b)
    ref_featB_only = jax.vmap(lambda f, mf: _reference(params, f, mf))(feats_b, mems_b)

    assert feat1.shape == (N, 2 * H) and lab1.shape == (N, C)
    assert featB.shape == (B, N, 2 * H) and labB.shape == (B, N, C)
    assert featB_only.shape == (B, N, 2 * H)
    assert jnp.allclose(feat1, ref_feat1, atol=1e-5, rtol=1e-5)
    assert jnp.allclose(lab1, ref_lab1, atol=1e-5, rtol=1e-5)
    assert jnp.allclose(feat_only, ref_feat_only, atol=1e-5, rtol=1e-5)
    assert jnp.allclose(featB, ref_featB, atol=1e-5, rtol=1e-5)
    assert jnp.allclose(labB, ref_labB, atol=1e-5, rtol=1e-5)
    assert jnp.allclose(featB_only, ref_featB_only, atol=1e-5, rtol=1e-5)

    print("KERNEL_OK")
</pallas_src>

<mosaic_0001>
module attributes {stable_mosaic.version = 11 : i64} {
  func.func @_fan_feat_lab_kernel(%arg0: i32, %arg1: memref<1x8x32xf32, #tpu.memory_space<vmem>>, %arg2: memref<1x16x32xf32, #tpu.memory_space<vmem>>, %arg3: memref<1x8x1xi32, #tpu.memory_space<vmem>>, %arg4: memref<1x16x1xi32, #tpu.memory_space<vmem>>, %arg5: memref<32x32xf32, #tpu.memory_space<vmem>>, %arg6: memref<1x32xf32, #tpu.memory_space<vmem>>, %arg7: memref<32x32xf32, #tpu.memory_space<vmem>>, %arg8: memref<1x32xf32, #tpu.memory_space<vmem>>, %arg9: memref<1x8x64xf32, #tpu.memory_space<vmem>>, %arg10: memref<1x8x7xf32, #tpu.memory_space<vmem>>) attributes {dimension_semantics = [#tpu.dimension_semantics<parallel>], iteration_bounds = array<i64: 1>, scalar_prefetch = 0 : i64, scratch_operands = 0 : i64, tpu.core_type = #tpu.core_type<tc>, window_params = [{transform_indices = @transform_0, window_bounds = array<i64: 1, 8, 32>}, {transform_indices = @transform_1, window_bounds = array<i64: 1, 16, 32>}, {transform_indices = @transform_2, window_bounds = array<i64: 1, 8, 1>}, {transform_indices = @transform_3, window_bounds = array<i64: 1, 16, 1>}, {pipeline_mode = #tpu.pipeline_mode<synchronous>, transform_indices = @transform_4, window_bounds = array<i64: 32, 32>}, {pipeline_mode = #tpu.pipeline_mode<synchronous>, transform_indices = @transform_5, window_bounds = array<i64: 1, 32>}, {pipeline_mode = #tpu.pipeline_mode<synchronous>, transform_indices = @transform_6, window_bounds = array<i64: 32, 32>}, {pipeline_mode = #tpu.pipeline_mode<synchronous>, transform_indices = @transform_7, window_bounds = array<i64: 1, 32>}, {transform_indices = @transform_8, window_bounds = array<i64: 1, 8, 64>}, {transform_indices = @transform_9, window_bounds = array<i64: 1, 8, 7>}]} {
    %c0 = arith.constant 0 : index
    %c0_0 = arith.constant 0 : index
    %c0_1 = arith.constant 0 : index
    %0 = vector.load %arg1[%c0, %c0_0, %c0_1] : memref<1x8x32xf32, #tpu.memory_space<vmem>>, vector<1x8x32xf32>
    %c0_2 = arith.constant 0 : index
    %c0_3 = arith.constant 0 : index
    %c0_4 = arith.constant 0 : index
    %1 = vector.load %arg2[%c0_2, %c0_3, %c0_4] : memref<1x16x32xf32, #tpu.memory_space<vmem>>, vector<1x16x32xf32>
    %2 = vector.shape_cast %0 : vector<1x8x32xf32> to vector<8x32xf32>
    %c0_5 = arith.constant 0 : index
    %c0_6 = arith.constant 0 : index
    %3 = vector.load %arg5[%c0_5, %c0_6] : memref<32x32xf32, #tpu.memory_space<vmem>>, vector<32x32xf32>
    %cst = arith.constant dense<0.000000e+00> : vector<8x32xf32>
    %4 = tpu.matmul %2, %3, %cst {dimension_numbers = #tpu.dot_dimension_numbers<[1], [0], [0], [1], [0, 0, 1, 1], [], []>} : vector<8x32xf32>, vector<32x32xf32>, vector<8x32xf32> -> vector<8x32xf32>
    %c0_7 = arith.constant 0 : index
    %c0_8 = arith.constant 0 : index
    %5 = vector.load %arg6[%c0_7, %c0_8] : memref<1x32xf32, #tpu.memory_space<vmem>>, vector<1x32xf32>
    %6 = vector.broadcast %5 : vector<1x32xf32> to vector<8x32xf32>
    %7 = arith.addf %4, %6 : vector<8x32xf32>
    %8 = vector.shape_cast %1 : vector<1x16x32xf32> to vector<16x32xf32>
    %c0_9 = arith.constant 0 : index
    %c0_10 = arith.constant 0 : index
    %9 = vector.load %arg7[%c0_9, %c0_10] : memref<32x32xf32, #tpu.memory_space<vmem>>, vector<32x32xf32>
    %cst_11 = arith.constant dense<0.000000e+00> : vector<16x32xf32>
    %10 = tpu.matmul %8, %9, %cst_11 {dimension_numbers = #tpu.dot_dimension_numbers<[1], [0], [0], [1], [0, 0, 1, 1], [], []>} : vector<16x32xf32>, vector<32x32xf32>, vector<16x32xf32> -> vector<16x32xf32>
    %c0_12 = arith.constant 0 : index
    %c0_13 = arith.constant 0 : index
    %11 = vector.load %arg8[%c0_12, %c0_13] : memref<1x32xf32, #tpu.memory_space<vmem>>, vector<1x32xf32>
    %12 = vector.broadcast %11 : vector<1x32xf32> to vector<16x32xf32>
    %13 = arith.addf %10, %12 : vector<16x32xf32>
    %14 = vector.shape_cast %7 : vector<8x32xf32> to vector<1x8x32xf32>
    %15 = vector.shape_cast %13 : vector<16x32xf32> to vector<1x16x32xf32>
    "tpu.trace_start"() <{level = 10 : i32, message = "bnh,bmh->bnm"}> : () -> ()
    %cst_14 = arith.constant dense<0.000000e+00> : vector<1x8x16xf32>
    %16 = tpu.matmul %14, %15, %cst_14 {dimension_numbers = #tpu.dot_dimension_numbers<[2], [2], [1], [1], [0, 0, 0, 1, 1, 1], [0], [0]>} : vector<1x8x32xf32>, vector<1x16x32xf32>, vector<1x8x16xf32> -> vector<1x8x16xf32>
    "tpu.trace_stop"() : () -> ()
    "tpu.trace_start"() <{level = 10 : i32, message = "bnm,bmh->bnh"}> : () -> ()
    %cst_15 = arith.constant dense<0.000000e+00> : vector<1x8x32xf32>
    %17 = tpu.matmul %16, %1, %cst_15 {dimension_numbers = #tpu.dot_dimension_numbers<[2], [1], [1], [2], [0, 0, 0, 1, 1, 2], [0], [0]>} : vector<1x8x16xf32>, vector<1x16x32xf32>, vector<1x8x32xf32> -> vector<1x8x32xf32>
    "tpu.trace_stop"() : () -> ()
    %18 = tpu.concatenate %0, %17 in 2 : vector<1x8x32xf32>, vector<1x8x32xf32> -> vector<1x8x64xf32>
    %c0_16 = arith.constant 0 : index
    %c0_17 = arith.constant 0 : index
    %c0_18 = arith.constant 0 : index
    %19 = vector.load %arg9[%c0_16, %c0_17, %c0_18] : memref<1x8x64xf32, #tpu.memory_space<vmem>>, vector<1x8x64xf32>
    tpu.vector_store %arg9[%c0_16, %c0_17, %c0_18], %18 {strides = array<i32>} : memref<1x8x64xf32, #tpu.memory_space<vmem>>, vector<1x8x64xf32>,
    %c0_19 = arith.constant 0 : index
    %c0_20 = arith.constant 0 : index
    %c0_21 = arith.constant 0 : index
    %20 = vector.load %arg4[%c0_19, %c0_20, %c0_21] : memref<1x16x1xi32, #tpu.memory_space<vmem>>, vector<1x16x1xi32>
    %21 = tpu.iota {dimensions = array<i32: 2>} : vector<1x16x7xi32>
    %22 = vector.broadcast %20 : vector<1x16x1xi32> to vector<1x16x7xi32>
    %23 = arith.cmpi eq, %22, %21 : vector<1x16x7xi32>
    %cst_22 = arith.constant 5.000000e-01 : f32
    %cst_23 = arith.constant 0.000000e+00 : f32
    %24 = vector.broadcast %cst_22 : f32 to vector<1x16x7xf32>
    %25 = vector.broadcast %cst_23 : f32 to vector<1x16x7xf32>
    %26 = arith.select %23, %24, %25 : vector<1x16x7xi1>, vector<1x16x7xf32>
    %c0_24 = arith.constant 0 : index
    %c0_25 = arith.constant 0 : index
    %c0_26 = arith.constant 0 : index
    %27 = vector.load %arg3[%c0_24, %c0_25, %c0_26] : memref<1x8x1xi32, #tpu.memory_space<vmem>>, vector<1x8x1xi32>
    %28 = tpu.iota {dimensions = array<i32: 2>} : vector<1x8x7xi32>
    %29 = vector.broadcast %27 : vector<1x8x1xi32> to vector<1x8x7xi32>
    %30 = arith.cmpi eq, %29, %28 : vector<1x8x7xi32>
    %cst_27 = arith.constant 5.000000e-01 : f32
    %cst_28 = arith.constant 0.000000e+00 : f32
    %31 = vector.broadcast %cst_27 : f32 to vector<1x8x7xf32>
    %32 = vector.broadcast %cst_28 : f32 to vector<1x8x7xf32>
    %33 = arith.select %30, %31, %32 : vector<1x8x7xi1>, vector<1x8x7xf32>
    "tpu.trace_start"() <{level = 10 : i32, message = "bnm,bmc->bnc"}> : () -> ()
    %cst_29 = arith.constant dense<0.000000e+00> : vector<1x8x7xf32>
    %34 = tpu.matmul %16, %26, %cst_29 {dimension_numbers = #tpu.dot_dimension_numbers<[2], [1], [1], [2], [0, 0, 0, 1, 1, 2], [0], [0]>} : vector<1x8x16xf32>, vector<1x16x7xf32>, vector<1x8x7xf32> -> vector<1x8x7xf32>
    "tpu.trace_stop"() : () -> ()
    %35 = arith.addf %34, %33 : vector<1x8x7xf32>
    %c0_30 = arith.constant 0 : index
    %c0_31 = arith.constant 0 : index
    %c0_32 = arith.constant 0 : index
    %36 = vector.load %arg10[%c0_30, %c0_31, %c0_32] : memref<1x8x7xf32, #tpu.memory_space<vmem>>, vector<1x8x7xf32>
    tpu.vector_store %arg10[%c0_30, %c0_31, %c0_32], %35 {strides = array<i32>} : memref<1x8x7xf32, #tpu.memory_space<vmem>>, vector<1x8x7xf32>,
    return
  }
  func.func @transform_0(%arg0: i32) -> (i32, i32, i32) {
    %c0_i32 = arith.constant 0 : i32
    %c0_i32_0 = arith.constant 0 : i32
    %c0_i32_1 = arith.constant 0 : i32
    return %arg0, %c0_i32, %c0_i32_0 : i32, i32, i32
  }
  func.func @transform_1(%arg0: i32) -> (i32, i32, i32) {
    %c0_i32 = arith.constant 0 : i32
    %c0_i32_0 = arith.constant 0 : i32
    %c0_i32_1 = arith.constant 0 : i32
    return %arg0, %c0_i32, %c0_i32_0 : i32, i32, i32
  }
  func.func @transform_2(%arg0: i32) -> (i32, i32, i32) {
    %c0_i32 = arith.constant 0 : i32
    %c0_i32_0 = arith.constant 0 : i32
    %c0_i32_1 = arith.constant 0 : i32
    return %arg0, %c0_i32, %c0_i32_0 : i32, i32, i32
  }
  func.func @transform_3(%arg0: i32) -> (i32, i32, i32) {
    %c0_i32 = arith.constant 0 : i32
    %c0_i32_0 = arith.constant 0 : i32
    %c0_i32_1 = arith.constant 0 : i32
    return %arg0, %c0_i32, %c0_i32_0 : i32, i32, i32
  }
  func.func @transform_4(%arg0: i32) -> (i32, i32) {
    %c0_i32 = arith.constant 0 : i32
    %c0_i32_0 = arith.constant 0 : i32
    %c0_i32_1 = arith.constant 0 : i32
    return %c0_i32, %c0_i32_0 : i32, i32
  }
  func.func @transform_5(%arg0: i32) -> (i32, i32) {
    %c0_i32 = arith.constant 0 : i32
    %c0_i32_0 = arith.constant 0 : i32
    %c0_i32_1 = arith.constant 0 : i32
    return %c0_i32, %c0_i32_0 : i32, i32
  }
  func.func @transform_6(%arg0: i32) -> (i32, i32) {
    %c0_i32 = arith.constant 0 : i32
    %c0_i32_0 = arith.constant 0 : i32
    %c0_i32_1 = arith.constant 0 : i32
    return %c0_i32, %c0_i32_0 : i32, i32
  }
  func.func @transform_7(%arg0: i32) -> (i32, i32) {
    %c0_i32 = arith.constant 0 : i32
    %c0_i32_0 = arith.constant 0 : i32
    %c0_i32_1 = arith.constant 0 : i32
    return %c0_i32, %c0_i32_0 : i32, i32
  }
  func.func @transform_8(%arg0: i32) -> (i32, i32, i32) {
    %c0_i32 = arith.constant 0 : i32
    %c0_i32_0 = arith.constant 0 : i32
    %c0_i32_1 = arith.constant 0 : i32
    return %arg0, %c0_i32, %c0_i32_0 : i32, i32, i32
  }
  func.func @transform_9(%arg0: i32) -> (i32, i32, i32) {
    %c0_i32 = arith.constant 0 : i32
    %c0_i32_0 = arith.constant 0 : i32
    %c0_i32_1 = arith.constant 0 : i32
    return %arg0, %c0_i32, %c0_i32_0 : i32, i32, i32
  }
}

</mosaic_0001>

<llo_original>
// kernel: feature_augmentation_cat.1
$region0: #{feature_augmentation_cat.1}
  #allocation0 [shape = 'u32[]', space=smem, size = 0x4, offset = 0x4, fixed_abs, tag = 'smem constant byte address 0x4 - core index']
  #allocation1 [shape = 'u32[72,128]{1,0:T(1,128)}', space=vmem, size = 0x9000, scoped, tag = 'internal scratch']
  %s0 = inlined_call_operand.vmem [shape: f32[1,8,32], index: 0, kind: input, shape index: {}]
  %s1 = inlined_call_operand.vmem [shape: f32[1,16,32], index: 1, kind: input, shape index: {}]
  %s2 = inlined_call_operand.vmem [shape: s32[1,8,1], index: 2, kind: input, shape index: {}]
  %s3 = inlined_call_operand.vmem [shape: s32[1,16,1], index: 3, kind: input, shape index: {}]
  %s4 = inlined_call_operand.vmem [shape: f32[32,32], index: 4, kind: input, shape index: {}]
  %s5 = inlined_call_operand.vmem [shape: f32[1,32], index: 5, kind: input, shape index: {}]
  %s6 = inlined_call_operand.vmem [shape: f32[32,32], index: 6, kind: input, shape index: {}]
  %s7 = inlined_call_operand.vmem [shape: f32[1,32], index: 7, kind: input, shape index: {}]
  %s8 = inlined_call_operand.hbm [shape: f32[1,8,64], index: 8, kind: output, shape index: {0}]
  %s9 = inlined_call_operand.hbm [shape: f32[1,8,7], index: 9, kind: output, shape index: {1}]
  %10 = xla_tuple %s8, %s9
  %s11 = sld [smem:[#allocation0]]
  $region50: #{feature_augmentation_cat.1} parent=0
    _
  %s13 = ssub.s32 1, %s11
  %s14 = scalar_select 0, %s13, %s11
  $region1: #{feature_augmentation_cat.1} parent=0
    #allocation2 [shape = 'u8[4096]{0}', space=vmem, size = 0x1000, scoped, tag = 'output window, operand 0, single buffered']
    #allocation3 [shape = 's32[1]{0}', space=sflag, size = 0x4, scoped, tag = 'scoped memory for feature_augmentation_cat.1']
    #allocation4 [shape = 'u8[4096]{0}', space=vmem, size = 0x1000, scoped, tag = 'output window, operand 1, single buffered']
    #allocation5 [shape = 's32[1]{0}', space=sflag, size = 0x4, scoped, tag = 'scoped memory for feature_augmentation_cat.1']
    %15 = vsyncpa [#allocation3], 0
    %16 = vsyncpa [#allocation5], 0
    // Predicated region
    $region2: #{feature_augmentation_cat.1} parent=1 // pred_check
      _
    $region3: #{feature_augmentation_cat.1} parent=1 // pred_check_branch
      %18 = sbr.rel (0) target = $region5
    $region4: #{feature_augmentation_cat.1} parent=1 // pred_region
      _
    $region5: #{feature_augmentation_cat.1} parent=1 // pred_fallthru
      _
    // Predicated region
    $region6: #{feature_augmentation_cat.1} parent=1 // pred_check
      _
    $region7: #{feature_augmentation_cat.1} parent=1 // pred_check_branch
      %20 = sbr.rel (0) target = $region9
    $region8: #{feature_augmentation_cat.1} parent=1 // pred_region
      _
    $region9: #{feature_augmentation_cat.1} parent=1 // pred_fallthru
      _
    // Predicated region
    $region10: #{feature_augmentation_cat.1} parent=1 // pred_check
      _
    $region11: #{feature_augmentation_cat.1} parent=1 // pred_check_branch
      %22 = sbr.rel (0) target = $region13
    $region12: #{feature_augmentation_cat.1} parent=1 // pred_region
      _
    $region13: #{feature_augmentation_cat.1} parent=1 // pred_fallthru
      _
    // Predicated region
    $region14: #{feature_augmentation_cat.1} parent=1 // pred_check
      _
    $region15: #{feature_augmentation_cat.1} parent=1 // pred_check_branch
      %24 = sbr.rel (0) target = $region17
    $region16: #{feature_augmentation_cat.1} parent=1 // pred_region
      _
    $region17: #{feature_augmentation_cat.1} parent=1 // pred_fallthru
      _
    // Predicated region
    $region18: #{feature_augmentation_cat.1} parent=1 // pred_check
      _
    $region19: #{feature_augmentation_cat.1} parent=1 // pred_check_branch
      %26 = sbr.rel (0) target = $region21
    $region20: #{feature_augmentation_cat.1} parent=1 // pred_region
      _
    $region21: #{feature_augmentation_cat.1} parent=1 // pred_fallthru
      _
    // Predicated region
    $region22: #{feature_augmentation_cat.1} parent=1 // pred_check
      _
    $region23: #{feature_augmentation_cat.1} parent=1 // pred_check_branch
      %28 = sbr.rel (0) target = $region25
    $region24: #{feature_augmentation_cat.1} parent=1 // pred_region
      _
    $region25: #{feature_augmentation_cat.1} parent=1 // pred_fallthru
      _
    // Predicated region
    $region26: #{feature_augmentation_cat.1} parent=1 // pred_check
      _
    $region27: #{feature_augmentation_cat.1} parent=1 // pred_check_branch
      %30 = sbr.rel (0) target = $region29
    $region28: #{feature_augmentation_cat.1} parent=1 // pred_region
      _
    $region29: #{feature_augmentation_cat.1} parent=1 // pred_fallthru
      _
    // Predicated region
    $region30: #{feature_augmentation_cat.1} parent=1 // pred_check
      _
    $region31: #{feature_augmentation_cat.1} parent=1 // pred_check_branch
      %32 = sbr.rel (0) target = $region33
    $region32: #{feature_augmentation_cat.1} parent=1 // pred_region
      _
    $region33: #{feature_augmentation_cat.1} parent=1 // pred_fallthru
      _
    %v33 = vld [vmem:[%s0] sm:$0xff]
    %v34 = vld [vmem:[%s1] sm:$0xff]
    %v35 = vld [vmem:[%s1 + $0x8] sm:$0xff]
    %v36 = vld [vmem:[%s4] sm:$0xff]
    %v37 = vld [vmem:[%s4 + $0x8] sm:$0xff]
    %v38 = vld [vmem:[%s4 + $0x10] sm:$0xff]
    %v39 = vld [vmem:[%s4 + $0x18] sm:$0xff]
    %v40 = vld [vmem:[%s5] sm:$0x1]
    %v42 = vperm.slane %v40, 0
    %vm44 = vcmask 261120
    %v46 = vsel %vm44, %v33, 0
    %48 = vmatpush.msra.mxu0 0.0
    %49 = vmatpush.msra.mxu0 0.0
    %50 = vmatpush.msra.mxu0 0.0
    %51 = vmatpush.msra.mxu0 0.0
    %52 = vmatpush.msra.mxu0 0.0
    %53 = vmatpush.msra.mxu0 0.0
    %54 = vmatpush.msra.mxu0 0.0
    %55 = vmatpush.msra.mxu0 0.0
    %56 = vmatpush.msra.mxu0 0.0
    %57 = vmatpush.msra.mxu0 0.0
    %58 = vmatpush.msra.mxu0 0.0
    %59 = vmatpush.msra.mxu0 0.0
    %60 = vmatpush.msra.mxu0 %v39
    %61 = vmatpush.msra.mxu0 %v38
    %62 = vmatpush.msra.mxu0 %v37
    %63 = vmatpush.msra.mxu0 %v36
    %64 = vmatmul.f32.gmra.mxu0 %v46
    %v65 = vpop.f32.mrf.mxu0
    %v66 = vadd.f32 %v42, %v65
    %67 = vdwg.mxu0
    %v68 = vld [vmem:[%s6] sm:$0xff]
    %v69 = vld [vmem:[%s6 + $0x8] sm:$0xff]
    %v70 = vld [vmem:[%s6 + $0x10] sm:$0xff]
    %v71 = vld [vmem:[%s6 + $0x18] sm:$0xff]
    %v72 = vld [vmem:[%s7] sm:$0x1]
    %v74 = vperm.slane %v72, 0
    %v77 = vsel %vm44, %v34, 0
    %v80 = vsel %vm44, %v35, 0
    %82 = vmatpush.msra.mxu0 0.0
    %83 = vmatpush.msra.mxu0 0.0
    %84 = vmatpush.msra.mxu0 0.0
    %85 = vmatpush.msra.mxu0 0.0
    %86 = vmatpush.msra.mxu0 0.0
    %87 = vmatpush.msra.mxu0 0.0
    %88 = vmatpush.msra.mxu0 0.0
    %89 = vmatpush.msra.mxu0 0.0
    %90 = vmatpush.msra.mxu0 0.0
    %91 = vmatpush.msra.mxu0 0.0
    %92 = vmatpush.msra.mxu0 0.0
    %93 = vmatpush.msra.mxu0 0.0
    %94 = vmatpush.msra.mxu0 %v71
    %95 = vmatpush.msra.mxu0 %v70
    %96 = vmatpush.msra.mxu0 %v69
    %97 = vmatpush.msra.mxu0 %v68
    %98 = vmatmul.f32.gmra.mxu0 %v77
    %v99 = vpop.f32.mrf.mxu0
    %v100 = vadd.f32 %v74, %v99
    %101 = vmatmul.f32.gmra.mxu0 %v80
    %v102 = vpop.f32.mrf.mxu0
    %v103 = vadd.f32 %v74, %v102
    %104 = vdwg.mxu0
    %v106 = vsel %vm44, %v66, 0
    %v109 = vsel %vm44, %v100, 0
    %v112 = vsel %vm44, %v103, 0
    %114 = vmatpush.xpose.msra.mxu0 0.0
    %115 = vmatpush.xpose.msra.mxu0 0.0
    %116 = vmatpush.xpose.msra.mxu0 0.0
    %117 = vmatpush.xpose.msra.mxu0 0.0
    %118 = vmatpush.xpose.msra.mxu0 0.0
    %119 = vmatpush.xpose.msra.mxu0 0.0
    %120 = vmatpush.xpose.msra.mxu0 0.0
    %121 = vmatpush.xpose.msra.mxu0 0.0
    %122 = vmatpush.xpose.msra.mxu0 0.0
    %123 = vmatpush.xpose.msra.mxu0 0.0
    %124 = vmatpush.xpose.msra.mxu0 0.0
    %125 = vmatpush.xpose.msra.mxu0 0.0
    %126 = vmatpush.xpose.msra.mxu0 0.0
    %127 = vmatpush.xpose.msra.mxu0 0.0
    %128 = vmatpush.xpose.msra.mxu0 %v112
    %129 = vmatpush.xpose.msra.mxu0 %v109
    %130 = vmatmul.f32.gmra.mxu0 %v106
    %v131 = vpop.f32.mrf.mxu0
    %v132 = vadd.f32 0.0, %v131
    %133 = vdwg.mxu0
    %vm134 = vcmask 130048
    %v136 = vsel %vm134, %v132, 0
    %138 = vmatpush.msra.mxu0 0.0
    %139 = vmatpush.msra.mxu0 0.0
    %140 = vmatpush.msra.mxu0 0.0
    %141 = vmatpush.msra.mxu0 0.0
    %142 = vmatpush.msra.mxu0 0.0
    %143 = vmatpush.msra.mxu0 0.0
    %144 = vmatpush.msra.mxu0 0.0
    %145 = vmatpush.msra.mxu0 0.0
    %146 = vmatpush.msra.mxu0 0.0
    %147 = vmatpush.msra.mxu0 0.0
    %148 = vmatpush.msra.mxu0 0.0
    %149 = vmatpush.msra.mxu0 0.0
    %150 = vmatpush.msra.mxu0 0.0
    %151 = vmatpush.msra.mxu0 0.0
    %152 = vmatpush.msra.mxu0 %v35
    %153 = vmatpush.msra.mxu0 %v34
    %154 = vmatmul.f32.gmra.mxu0 %v136
    %v155 = vpop.f32.mrf.mxu0
    %v156 = vadd.f32 0.0, %v155
    %157 = vdwg.mxu0
    %159 = vrot.lane.b32.xlu0 %v156, 32
    %v160 = vpop.permute.xlu0 %159
    %v162 = vsel %vm44, %v33, %v160
    %vm163 = vcmask 523264
    %164 = vst.msk [vmem:[#allocation2] sm:$0xff] %vm163, %v162
    %v165 = vld [vmem:[%s3] sm:$0xff]
    %v166 = vld [vmem:[%s3 + $0x8] sm:$0xff]
    %v167 = vlaneseq
    %v168 = vand.u32 %v167, 127
    %169 = vset.pattern.permute.xlu0 0
    %170 = vperm.xlu0 %169, %v165
    %v171 = vpop.permute.xlu0 %170
    %172 = vset.pattern.permute.xlu0 0
    %173 = vperm.xlu0 %172, %v166
    %v174 = vpop.permute.xlu0 %173
    %vm175 = vcmp.eq.s32.totalorder %v171, %v168
    %vm176 = vcmp.eq.s32.totalorder %v174, %v168
    %v177 = vsel %vm175, 0.5, 0.0
    %v178 = vsel %vm176, 0.5, 0.0
    %v179 = vld [vmem:[%s2] sm:$0xff]
    %180 = vset.pattern.permute.xlu0 0
    %181 = vperm.xlu0 %180, %v179
    %v182 = vpop.permute.xlu0 %181
    %vm183 = vcmp.eq.s32.totalorder %v182, %v168
    %v184 = vsel %vm183, 0.5, 0.0
    %185 = vmatpush.msra.mxu0 0.0
    %186 = vmatpush.msra.mxu0 0.0
    %187 = vmatpush.msra.mxu0 0.0
    %188 = vmatpush.msra.mxu0 0.0
    %189 = vmatpush.msra.mxu0 0.0
    %190 = vmatpush.msra.mxu0 0.0
    %191 = vmatpush.msra.mxu0 0.0
    %192 = vmatpush.msra.mxu0 0.0
    %193 = vmatpush.msra.mxu0 0.0
    %194 = vmatpush.msra.mxu0 0.0
    %195 = vmatpush.msra.mxu0 0.0
    %196 = vmatpush.msra.mxu0 0.0
    %197 = vmatpush.msra.mxu0 0.0
    %198 = vmatpush.msra.mxu0 0.0
    %199 = vmatpush.msra.mxu0 %v178
    %200 = vmatpush.msra.mxu0 %v177
    %201 = vmatmul.f32.gmra.mxu0 %v136
    %v202 = vpop.f32.mrf.mxu0
    %v203 = vadd.f32 %v184, %v202
    %204 = vdwg.mxu0
    %vm205 = vcmask 56320
    %206 = vst.msk [vmem:[#allocation4] sm:$0xff] %vm205, %v203
    // Predicated region
    $region34: #{feature_augmentation_cat.1} parent=1 // pred_check
      _
    $region35: #{feature_augmentation_cat.1} parent=1 // pred_check_branch
      %208 = sbr.rel (0) target = $region37
    $region36: #{feature_augmentation_cat.1} parent=1 // pred_region
      %210 = vsyncadd [#allocation3], 0
      %s212 = sshll.u32 [#allocation2], 4
      %s213 = int_to_ptr.vmem [resolvable:$true] %s212
      %s214 = sshll.u32 %s8, 4
      %s215 = int_to_ptr.hbm [resolvable:$true] %s214
      %217 = dma.vmem_to_hbm [thread:$0]  %s213, 128, %s215, [#allocation3]
    $region37: #{feature_augmentation_cat.1} parent=1 // pred_fallthru
      _
    // Predicated region
    $region38: #{feature_augmentation_cat.1} parent=1 // pred_check
      _
    $region39: #{feature_augmentation_cat.1} parent=1 // pred_check_branch
      %219 = sbr.rel (0) target = $region41
    $region40: #{feature_augmentation_cat.1} parent=1 // pred_region
      %221 = vsyncadd [#allocation5], 0
      %s223 = sshll.u32 [#allocation4], 4
      %s224 = int_to_ptr.vmem [resolvable:$true] %s223
      %s225 = sshll.u32 %s9, 4
      %s226 = int_to_ptr.hbm [resolvable:$true] %s225
      %228 = dma.vmem_to_hbm [thread:$0]  %s224, 128, %s226, [#allocation5]
    $region41: #{feature_augmentation_cat.1} parent=1 // pred_fallthru
      _
    // Predicated region
    $region42: #{feature_augmentation_cat.1} parent=1 // pred_check
      _
    $region43: #{feature_augmentation_cat.1} parent=1 // pred_check_branch
      %230 = sbr.rel (0) target = $region45
    $region44: #{feature_augmentation_cat.1} parent=1 // pred_region
      %232 = dma.done [#allocation3], 128
    $region45: #{feature_augmentation_cat.1} parent=1 // pred_fallthru
      _
    // Predicated region
    $region46: #{feature_augmentation_cat.1} parent=1 // pred_check
      _
    $region47: #{feature_augmentation_cat.1} parent=1 // pred_check_branch
      %234 = sbr.rel (0) target = $region49
    $region48: #{feature_augmentation_cat.1} parent=1 // pred_region
      %236 = dma.done [#allocation5], 128
    $region49: #{feature_augmentation_cat.1} parent=1 // pred_fallthru
      _
    %237 = vsyncpa [#allocation3], 1
    %238 = vsyncpa [#allocation5], 1

</llo_original>
